<compile_context>
chip_gen: v6e
topology: v6e:2x2x1
jax: 0.10.0
libtpu: 0.0.40
codegen_flags: <defaults>
</compile_context>

<pallas_src>
import jax
import jax.numpy as jnp
from jax import lax
from jax.experimental import pallas as pl
from jax.experimental.pallas import tpu as pltpu


# ---------------------------------------------------------------------------
# Kernels
# ---------------------------------------------------------------------------
def _fused_kernel(x_ref, o_ref):
    """Block: (bt, C, tile_s, 128); the whole channel extent is resident."""
    x = x_ref[...]
    # Channel max: axis=1 is a non-minor dim -> elementwise VPU max.
    max_feat = jnp.max(x, axis=1, keepdims=True)              # (bt, 1, tile_s, 128)
    # sigmoid(-m) == 1 - sigmoid(m); transcendental lands on the EUP slot.
    gate = jax.nn.sigmoid(-max_feat.astype(jnp.float32))
    # Cast the (tiny) gate once; multiply in the native dtype (bf16-friendly).
    o_ref[...] = gate.astype(o_ref.dtype) * x


def _make_gate_kernel(c_total, c_tile):
    """Pass 1 of the large-C path: C-tiled running max -> sigmoid gate."""
    need_mask = (c_total % c_tile) != 0

    def kernel(x_ref, g_ref, m_sc):
        k = pl.program_id(2)

        @pl.when(k == 0)
        def _init():
            m_sc[...] = jnp.full_like(m_sc, -jnp.inf)

        x = x_ref[...]
        if need_mask:
            # Last channel chunk may be partial; mask out-of-range channels so
            # padded (undefined) rows never win the max.
            c_idx = k * c_tile + lax.broadcasted_iota(jnp.int32, x.shape, 1)
            x = jnp.where(c_idx < c_total, x, jnp.array(-jnp.inf, dtype=x.dtype))
        chunk_max = jnp.max(x, axis=1, keepdims=True).astype(jnp.float32)
        m_sc[...] = jnp.maximum(m_sc[...], chunk_max)

        @pl.when(k == pl.num_programs(2) - 1)
        def _finalize():
            g_ref[...] = jax.nn.sigmoid(-m_sc[...])

    return kernel


def _mul_kernel(x_ref, g_ref, o_ref):
    """Pass 2 of the large-C path: out = gate * x (broadcast over channels)."""
    o_ref[...] = g_ref[...].astype(o_ref.dtype) * x_ref[...]


# ---------------------------------------------------------------------------
# Tiling / wrappers
# ---------------------------------------------------------------------------
def _choose_fused_tiles(b, s_total, row_bytes, block_bytes, min_steps):
    """(bt, tile_s) for the fused kernel's (bt, C, tile_s, 128) block."""
    max_rows = max(1, block_bytes // row_bytes)
    if max_rows >= s_total:
        tile_s = s_total                            # full extent: any value legal
    else:
        tile_s = max(8, (max_rows // 8) * 8)        # tiled: second-minor dim % 8

    # Give the pipeline / both v7x TensorCores several steps when there is
    # enough work, but keep blocks >= ~512 KiB so the ~0.35us per-step
    # overhead stays hidden behind the DMAs.
    steps = b * pl.cdiv(s_total, tile_s)
    if steps < min_steps and s_total > 8:
        want = max(8, (pl.cdiv(s_total * b, min_steps) // 8) * 8)
        floor_rows = max(8, (((512 * 1024) // row_bytes) // 8) * 8)
        tile_s = min(tile_s, max(want, floor_rows))

    # Block several batch elements only when one spatial tile already covers
    # the whole extent (tiny per-batch work) and VMEM budget remains.
    bt = 1
    if tile_s == s_total:
        max_bt = max(1, block_bytes // (row_bytes * s_total))
        target_steps = min(min_steps, b)
        for cand in range(min(b, max_bt), 1, -1):
            if b % cand == 0 and (b // cand) >= target_steps:
                bt = cand
                break
    return bt, tile_s


def _fused_call(x4, row_bytes, block_bytes, min_steps, donate_input):
    b, c, s_total, _ = x4.shape
    bt, tile_s = _choose_fused_tiles(b, s_total, row_bytes, block_bytes, min_steps)
    block = (bt, c, tile_s, 128)
    blk_bytes = bt * tile_s * row_bytes
    vmem_limit = min(6 * blk_bytes + (4 << 20), 64 << 20)

    return pl.pallas_call(
        _fused_kernel,
        out_shape=jax.ShapeDtypeStruct(x4.shape, x4.dtype),
        grid_spec=pltpu.PrefetchScalarGridSpec(
            num_scalar_prefetch=0,
            grid=(b // bt, pl.cdiv(s_total, tile_s)),
            in_specs=[pl.BlockSpec(block, lambda i, j: (i, 0, j, 0))],
            out_specs=pl.BlockSpec(block, lambda i, j: (i, 0, j, 0)),
        ),
        compiler_params=pltpu.CompilerParams(
            dimension_semantics=("parallel", "parallel"),
            vmem_limit_bytes=vmem_limit,
        ),
        # Donate only when the input is the fresh padded intermediate (always
        # dead after this call); aliasing the caller's live array could force
        # XLA to insert a defensive copy instead.
        input_output_aliases={0: 0} if donate_input else {},
    )(x4)


def _two_pass_call(x4, block_bytes):
    """Large-C path: the full channel row does not fit one block."""
    b, c, s_total, _ = x4.shape
    itemsize = jnp.dtype(x4.dtype).itemsize

    # Modest spatial tile (keeps per-channel contiguous DMA chunks a few KiB,
    # leaves many parallel steps); channel tile fills the block budget.
    tile_s = s_total if s_total <= 32 else 32
    c_tile = max(1, min(c, block_bytes // (tile_s * 128 * itemsize)))

    grid = (b, pl.cdiv(s_total, tile_s), pl.cdiv(c, c_tile))
    x_block = (1, c_tile, tile_s, 128)
    g_block = (1, 1, tile_s, 128)
    x_bytes = c_tile * tile_s * 128 * itemsize
    g_bytes = tile_s * 128 * 4
    vmem_limit = min(6 * x_bytes + 6 * g_bytes + (4 << 20), 64 << 20)

    # Pass 1: channel-tiled running max -> f32 gate of shape (B, 1, S, 128).
    gate = pl.pallas_call(
        _make_gate_kernel(c, c_tile),
        out_shape=jax.ShapeDtypeStruct((b, 1, s_total, 128), jnp.float32),
        grid_spec=pltpu.PrefetchScalarGridSpec(
            num_scalar_prefetch=0,
            grid=grid,
            in_specs=[pl.BlockSpec(x_block, lambda i, j, k: (i, k, j, 0))],
            out_specs=pl.BlockSpec(g_block, lambda i, j, k: (i, 0, j, 0)),
            scratch_shapes=[pltpu.VMEM((1, 1, tile_s, 128), jnp.float32)],
        ),
        compiler_params=pltpu.CompilerParams(
            dimension_semantics=("parallel", "parallel", "arbitrary"),
            vmem_limit_bytes=vmem_limit,
        ),
    )(x4)

    # Pass 2: broadcast multiply; all grid axes independent.
    return pl.pallas_call(
        _mul_kernel,
        out_shape=jax.ShapeDtypeStruct(x4.shape, x4.dtype),
        grid_spec=pltpu.PrefetchScalarGridSpec(
            num_scalar_prefetch=0,
            grid=grid,
            in_specs=[pl.BlockSpec(x_block, lambda i, j, k: (i, k, j, 0)),
                      pl.BlockSpec(g_block, lambda i, j, k: (i, 0, j, 0))],
            out_specs=pl.BlockSpec(x_block, lambda i, j, k: (i, k, j, 0)),
        ),
        compiler_params=pltpu.CompilerParams(
            dimension_semantics=("parallel", "parallel", "parallel"),
            vmem_limit_bytes=vmem_limit,
        ),
    )(x4, gate)


def _reversed_attention_jnp(x):
    """Pure-jnp reference / tiny-input fallback (matches the PyTorch module)."""
    max_feat = jnp.max(x, axis=1, keepdims=True)
    return (-1.0 * jax.nn.sigmoid(max_feat) + 1.0) * x


def reversed_attention(x, *, block_bytes=3 << 20, max_block_bytes=6 << 20,
                       min_kernel_bytes=256 << 10, min_grid_steps=8):
    """x: (B, C, H, W) float array -> (B, C, H, W)."""
    b, c, h, w = x.shape
    itemsize = jnp.dtype(x.dtype).itemsize

    # Tiny tensors: pallas_call launch + per-step overhead dominates; XLA wins.
    if b * c * h * w * itemsize < min_kernel_bytes:
        return _reversed_attention_jnp(x)

    hw = h * w
    s_total = pl.cdiv(hw, 128)
    hw_padded = s_total * 128

    x_flat = x.reshape(b, c, hw)
    padded = hw_padded != hw
    if padded:
        # Pad only up to a multiple of 128 (needed for the (S, 128) lane view).
        # No tile-multiple padding: partial spatial blocks are masked by Pallas.
        x_flat = jnp.pad(x_flat, ((0, 0), (0, 0), (0, hw_padded - hw)))
    x4 = x_flat.reshape(b, c, s_total, 128)

    row_bytes = c * 128 * itemsize                  # one spatial row, all channels
    if row_bytes * min(8, s_total) <= max_block_bytes:
        out4 = _fused_call(x4, row_bytes, block_bytes, min_grid_steps,
                           donate_input=padded)
    else:
        # Very large C: a full channel row exceeds the block budget (would blow
        # past scoped / physical VMEM, esp. v7x's 64 MiB) -> two-pass path.
        out4 = _two_pass_call(x4, block_bytes)

    out_flat = out4.reshape(b, c, hw_padded)
    if padded:
        out_flat = out_flat[:, :, :hw]
    return out_flat.reshape(b, c, h, w)


if __name__ == "__main__":
    key = jax.random.PRNGKey(0)
    # Small NCHW shape consistent with the module's forward.
    x = jax.random.normal(key, (2, 4, 16, 16), dtype=jnp.float32)
    ref = _reversed_attention_jnp(x)

    # 1) Force the fused Pallas path (default would take the tiny-input fallback).
    out = jax.block_until_ready(reversed_attention(x, min_kernel_bytes=0))
    assert out.shape == x.shape
    assert jnp.allclose(out, ref, atol=1e-5, rtol=1e-5)

    # 2) Exercise the large-C two-pass path (channel-tiled max with a partial
    #    last channel chunk) by shrinking the block budget on a small shape.
    x2 = jax.random.normal(jax.random.PRNGKey(1), (2, 20, 16, 16), dtype=jnp.float32)
    out2 = jax.block_until_ready(
        reversed_attention(x2, min_kernel_bytes=0,
                           block_bytes=8 * 1024, max_block_bytes=8 * 1024))
    assert jnp.allclose(out2, _reversed_attention_jnp(x2), atol=1e-5, rtol=1e-5)

    # 3) Default call on the tiny input (takes the jnp fallback) for completeness.
    out3 = jax.block_until_ready(reversed_attention(x))
    assert jnp.allclose(out3, ref, atol=1e-5, rtol=1e-5)

    print("KERNEL_OK")
</pallas_src>

<mosaic_0001>
module attributes {stable_mosaic.version = 11 : i64} {
  func.func @_fused_kernel(%arg0: i32, %arg1: i32, %arg2: memref<1x4x2x128xf32, #tpu.memory_space<vmem>>, %arg3: memref<1x4x2x128xf32, #tpu.memory_space<vmem>>) attributes {dimension_semantics = [#tpu.dimension_semantics<parallel>, #tpu.dimension_semantics<parallel>], iteration_bounds = array<i64: 2, 1>, scalar_prefetch = 0 : i64, scratch_operands = 0 : i64, tpu.core_type = #tpu.core_type<tc>, window_params = [{transform_indices = @transform_0, window_bounds = array<i64: 1, 4, 2, 128>}, {transform_indices = @transform_1, window_bounds = array<i64: 1, 4, 2, 128>}]} {
    %c0 = arith.constant 0 : index
    %c0_0 = arith.constant 0 : index
    %c0_1 = arith.constant 0 : index
    %c0_2 = arith.constant 0 : index
    %0 = vector.load %arg2[%c0, %c0_0, %c0_1, %c0_2] : memref<1x4x2x128xf32, #tpu.memory_space<vmem>>, vector<1x4x2x128xf32>
    %cst = arith.constant dense<0xFF800000> : vector<1x2x128xf32>
    %1 = vector.multi_reduction <maximumf>, %0, %cst [1] : vector<1x4x2x128xf32> to vector<1x2x128xf32>
    %2 = vector.shape_cast %1 : vector<1x2x128xf32> to vector<1x1x2x128xf32>
    %cst_3 = arith.constant 0.000000e+00 : f32
    %3 = vector.broadcast %cst_3 : f32 to vector<1x1x2x128xf32>
    %4 = arith.subf %3, %2 : vector<1x1x2x128xf32>
    %5 = arith.negf %4 : vector<1x1x2x128xf32>
    %6 = math.exp %5 : vector<1x1x2x128xf32>
    %cst_4 = arith.constant 1.000000e+00 : f32
    %7 = vector.broadcast %cst_4 : f32 to vector<1x1x2x128xf32>
    %8 = arith.addf %7, %6 : vector<1x1x2x128xf32>
    %9 = arith.divf %7, %8 : vector<1x1x2x128xf32>
    %10 = vector.broadcast %9 : vector<1x1x2x128xf32> to vector<1x4x2x128xf32>
    %11 = arith.mulf %10, %0 : vector<1x4x2x128xf32>
    %c0_5 = arith.constant 0 : index
    %c0_6 = arith.constant 0 : index
    %c0_7 = arith.constant 0 : index
    %c0_8 = arith.constant 0 : index
    %12 = vector.load %arg3[%c0_5, %c0_6, %c0_7, %c0_8] : memref<1x4x2x128xf32, #tpu.memory_space<vmem>>, vector<1x4x2x128xf32>
    tpu.vector_store %arg3[%c0_5, %c0_6, %c0_7, %c0_8], %11 {strides = array<i32>} : memref<1x4x2x128xf32, #tpu.memory_space<vmem>>, vector<1x4x2x128xf32>,
    return
  }
  func.func @transform_0(%arg0: i32, %arg1: i32) -> (i32, i32, i32, i32) {
    %c0_i32 = arith.constant 0 : i32
    %c0_i32_0 = arith.constant 0 : i32
    %c0_i32_1 = arith.constant 0 : i32
    return %arg0, %c0_i32, %arg1, %c0_i32_0 : i32, i32, i32, i32
  }
  func.func @transform_1(%arg0: i32, %arg1: i32) -> (i32, i32, i32, i32) {
    %c0_i32 = arith.constant 0 : i32
    %c0_i32_0 = arith.constant 0 : i32
    %c0_i32_1 = arith.constant 0 : i32
    return %arg0, %c0_i32, %arg1, %c0_i32_0 : i32, i32, i32, i32
  }
}

</mosaic_0001>

<llo_original>
// kernel: tpu_custom_call.1
$region0: #{tpu_custom_call.1}
  #allocation0 [shape = 'u32[]', space=smem, size = 0x4, offset = 0x4, fixed_abs, tag = 'smem constant byte address 0x4 - core index']
  #allocation1 [shape = 'u32[144,128]{1,0:T(1,128)}', space=vmem, size = 0x12000, scoped, tag = 'internal scratch']
  %s0 = inlined_call_operand.hbm [shape: f32[2,4,2,128], index: 0, kind: input, shape index: {}]
  %s1 = inlined_call_operand.hbm [shape: f32[2,4,2,128], index: 1, kind: output, shape index: {}]
  %s2 = sld [smem:[#allocation0]]
  $region41: #{tpu_custom_call.1} parent=0
    _
  %s4 = ssub.s32 1, %s2
  %s5 = scalar_select 0, %s4, %s2
  $region1: #{tpu_custom_call.1} parent=0
    #allocation2 [shape = 'u8[8192]{0}', space=vmem, size = 0x2000, scoped, tag = 'input window, operand 0']
    #allocation3 [shape = 's32[2]{0}', space=sflag, size = 0x8, scoped, tag = 'scoped memory for tpu_custom_call.1']
    #allocation4 [shape = 's32[2]{0}', space=sflag, size = 0x8, scoped, tag = 'scoped memory for tpu_custom_call.1']
    #allocation5 [shape = 'u8[8192]{0}', space=vmem, size = 0x2000, scoped, tag = 'output window, operand 0']
    %6 = vsyncpa [#allocation3], 0
    %s7 = scalar_lea.sflag [#allocation3], 1
    %8 = vsyncpa %s7, 0
    %9 = vsyncpa [#allocation4], 0
    %s10 = scalar_lea.sflag [#allocation4], 1
    %11 = vsyncpa %s10, 0
    loop: start=0, step=1, limit=4
    $region2: #{tpu_custom_call.1} parent=1 // loop_pre_header
      _
    $region3: #{tpu_custom_call.1} parent=1 // loop_header
      %s13 = sphi 0, %s17
      %p14 = scmp.ge.s32.totalorder %s13, 4
      %s20 = sphi 0, %s32
      %s21 = sphi 0, %s28
      %s22 = sphi 0, %s20
      %s23 = sphi 0, %s21
      %s24 = sphi 0, %s22
      %s25 = sphi 0, %s23
      %s37 = sphi 0, %s39
      %s40 = sphi 0, %s37
      %s41 = sphi 0, %s40
      %s57 = sphi 0, %s41
      %s65 = sphi 0, %s67
      %s68 = sphi 0, %s65
      %s69 = sphi 0, %s68
      %s85 = sphi 0, %s69
    $region4: #{tpu_custom_call.1} parent=1 // loop_header_branch
      %16 = sbr.rel (%p14) target = $region8
    $region5: #{tpu_custom_call.1} parent=1 // loop_body
      %s18 = ssub.s32 %s13, 1
      %s19 = ssub.s32 %s13, 2
      %s26 = sadd.s32 1, %s21
      %p27 = scmp.ge.s32.totalorder %s26, 1
      %s28 = scalar_select %p27, 0, %s26
      %s29 = sadd.s32 1, %s20
      %s30 = scalar_select %p27, %s29, %s20
      %p31 = scmp.ge.s32.totalorder %s30, 2
      %s32 = scalar_select %p31, 0, %s30
      %s33 = ssub.s32 %s20, %s32
      %s34 = ssub.s32 %s21, %s28
      %s35 = sor.u32 %s33, %s34
      %p36 = scmp.eq.s32.totalorder %s35, 0
      %s38 = sadd.s32 %s37, 1
      %s39 = scalar_select %p36, %s37, %s38
      %p42 = pneg %p36
      %p43 = scmp.eq.s32.totalorder %s13, 1
      %p44 = por %p42, %p43
      %p45 = scmp.ne.s32.totalorder %s37, %s40
      %p46 = scmp.eq.s32.totalorder %s13, 0
      %p47 = por %p45, %p46
      %p48 = scmp.ne.s32.totalorder %s37, %s40
      %p49 = scmp.eq.s32.totalorder %s18, 1
      %p50 = por %p48, %p49
      %p51 = scmp.ne.s32.totalorder %s40, %s41
      %p52 = scmp.eq.s32.totalorder %s18, 0
      %p53 = por %p51, %p52
      %p54 = scmp.ne.s32.totalorder %s40, %s41
      %p55 = scmp.eq.s32.totalorder %s19, 1
      %p56 = por %p54, %p55
      %p58 = scmp.ne.s32.totalorder %s41, %s57
      %p59 = scmp.eq.s32.totalorder %s19, 0
      %p60 = por %p58, %p59
      %s61 = ssub.s32 %s20, %s32
      %s62 = ssub.s32 %s21, %s28
      %s63 = sor.u32 %s61, %s62
      %p64 = scmp.eq.s32.totalorder %s63, 0
      %s66 = sadd.s32 %s65, 1
      %s67 = scalar_select %p64, %s65, %s66
      %p70 = pneg %p64
      %p71 = scmp.eq.s32.totalorder %s13, 1
      %p72 = por %p70, %p71
      %p73 = scmp.ne.s32.totalorder %s65, %s68
      %p74 = scmp.eq.s32.totalorder %s13, 0
      %p75 = por %p73, %p74
      %p76 = scmp.ne.s32.totalorder %s65, %s68
      %p77 = scmp.eq.s32.totalorder %s18, 1
      %p78 = por %p76, %p77
      %p79 = scmp.ne.s32.totalorder %s68, %s69
      %p80 = scmp.eq.s32.totalorder %s18, 0
      %p81 = por %p79, %p80
      %p82 = scmp.ne.s32.totalorder %s68, %s69
      %p83 = scmp.eq.s32.totalorder %s19, 1
      %p84 = por %p82, %p83
      %p86 = scmp.ne.s32.totalorder %s69, %s85
      %p87 = scmp.eq.s32.totalorder %s19, 0
      %p88 = por %p86, %p87
      %p89 = scmp.le.s32.totalorder 1, %s13
      %p90 = scmp.lt.s32.totalorder %s13, 3
      %p91 = pnand %p89, %p90
      %p92 = pneg %p91
      // Predicated region
      $region9: #{tpu_custom_call.1} parent=5 // pred_check
        _
      $region10: #{tpu_custom_call.1} parent=5 // pred_check_branch
        %94 = sbr.rel (%p91) target = $region12
      $region11: #{tpu_custom_call.1} parent=5 // pred_region
        %s95 = ssub.s32 %s13, 1
      $region12: #{tpu_custom_call.1} parent=5 // pred_fallthru
        _
      %p96 = scmp.lt.s32.totalorder %s13, 2
      // Predicated region
      $region13: #{tpu_custom_call.1} parent=5 // pred_check
        %p97 = pneg %p96
      $region14: #{tpu_custom_call.1} parent=5 // pred_check_branch
        %99 = sbr.rel (%p97) target = $region16
      $region15: #{tpu_custom_call.1} parent=5 // pred_region
        // Predicated region
        $region17: #{tpu_custom_call.1} parent=15 // pred_check
          %p100 = pneg %p47
        $region18: #{tpu_custom_call.1} parent=15 // pred_check_branch
          %102 = sbr.rel (%p100) target = $region20
        $region19: #{tpu_custom_call.1} parent=15 // pred_region
          %s103 = sand.u32 %s37, 1
          %s104 = scalar_lea.sflag [#allocation3], %s103
          %s105 = sand.u32 %s37, 1
          %s106 = smul.addr %s105, 8
          %s107 = scalar_lea.vmem [#allocation2], %s106
          %s109 = ssub.s32 128, 128
          %110 = vsyncadd %s104, %s109
          %s111 = smul.addr %s20, 4
          %s112 = sadd.s32 %s21, %s111
          %s113 = smul.addr %s112, 32
          %s114 = scalar_lea.hbm %s0, %s113
          %s115 = sshll.u32 %s107, 4
          %s116 = int_to_ptr.vmem [resolvable:$true] %s115
          %121 = dma.hbm_to_vmem [thread:$0]  %s114, 128, %s116, %s104, 32, 32, 2
        $region20: #{tpu_custom_call.1} parent=15 // pred_fallthru
          _
      $region16: #{tpu_custom_call.1} parent=5 // pred_fallthru
        _
      %p122 = scmp.le.s32.totalorder 1, %s13
      %p123 = scmp.lt.s32.totalorder %s13, 3
      %p124 = pnand %p122, %p123
      %p125 = pneg %p124
      // Predicated region
      $region21: #{tpu_custom_call.1} parent=5 // pred_check
        _
      $region22: #{tpu_custom_call.1} parent=5 // pred_check_branch
        %127 = sbr.rel (%p124) target = $region24
      $region23: #{tpu_custom_call.1} parent=5 // pred_region
        %s128 = ssub.s32 %s13, 1
        %s129 = sand.u32 %s40, 1
        %s130 = scalar_lea.sflag [#allocation3], %s129
        %s131 = sand.u32 %s40, 1
        %s132 = smul.addr %s131, 8
        %s133 = scalar_lea.vmem [#allocation2], %s132
        // Predicated region
        $region25: #{tpu_custom_call.1} parent=23 // pred_check
          %p134 = pneg %p53
        $region26: #{tpu_custom_call.1} parent=23 // pred_check_branch
          %136 = sbr.rel (%p134) target = $region28
        $region27: #{tpu_custom_call.1} parent=23 // pred_region
          %137 = dma.done %s130, 128
        $region28: #{tpu_custom_call.1} parent=23 // pred_fallthru
          _
        %s138 = sand.u32 %s40, 1
        %s139 = scalar_lea.sflag [#allocation3], %s138
        %s140 = sand.u32 %s40, 1
        %s141 = smul.addr %s140, 8
        %s142 = scalar_lea.vmem [#allocation2], %s141
        %p143 = pneg %p53
        %p144 = pneg %p50
        %p145 = pneg %p81
        %p146 = pneg %p78
        %s147 = sand.u32 %s68, 1
        %s148 = scalar_lea.sflag [#allocation4], %s147
        %s149 = sand.u32 %s68, 1
        %s150 = smul.addr %s149, 8
        %s151 = scalar_lea.vmem [#allocation5], %s150
        %v152 = vld [vmem:[%s133] sm:$0x3]
        %v153 = vld [vmem:[%s133 + $0x2] sm:$0x3]
        %v154 = vld [vmem:[%s133 + $0x4] sm:$0x3]
        %v155 = vld [vmem:[%s133 + $0x6] sm:$0x3]
        %vm156 = vcmask 1041408
        %v157 = vsel %vm156, %v152, -inf
        %v158 = vsel %vm156, %v153, -inf
        %v159 = vsel %vm156, %v154, -inf
        %v160 = vsel %vm156, %v155, -inf
        %v161 = vmax.f32 %v157, %v158
        %v162 = vmax.f32 %v159, %v160
        %v163 = vmax.f32 %v161, %v162
        %v164 = vsub.f32 0.0, %v163
        %v165 = vxor.u32 %v164, 2147483648
        %v166 = vmul.f32 %v165, 1.442695
        %v167 = vpow.pop %v166
        %v168 = vadd.f32 %v167, 1.0
        %v169 = vrcp.pop %v168
        %v170 = vmul.f32 1.0, %v169
        %v171 = vmul.f32 %v170, %v152
        %v172 = vmul.f32 %v170, %v153
        %v173 = vmul.f32 %v170, %v154
        %v174 = vmul.f32 %v170, %v155
        %175 = vst [vmem:[%s151] sm:$0x3] %v171
        %176 = vst [vmem:[%s151 + $0x2] sm:$0x3] %v172
        %177 = vst [vmem:[%s151 + $0x4] sm:$0x3] %v173
        %178 = vst [vmem:[%s151 + $0x6] sm:$0x3] %v174
        %s179 = sand.u32 %s68, 1
        %s180 = scalar_lea.sflag [#allocation4], %s179
        %s181 = sand.u32 %s68, 1
        %s182 = smul.addr %s181, 8
        %s183 = scalar_lea.vmem [#allocation5], %s182
        // Predicated region
        $region29: #{tpu_custom_call.1} parent=23 // pred_check
          %p184 = pneg %p78
        $region30: #{tpu_custom_call.1} parent=23 // pred_check_branch
          %186 = sbr.rel (%p184) target = $region32
        $region31: #{tpu_custom_call.1} parent=23 // pred_region
          %s188 = ssub.s32 128, 128
          %189 = vsyncadd %s180, %s188
          %s190 = smul.addr %s22, 4
          %s191 = sadd.s32 %s23, %s190
          %s192 = smul.addr %s191, 32
          %s193 = scalar_lea.hbm %s1, %s192
          %s194 = sshll.u32 %s183, 4
          %s195 = int_to_ptr.vmem [resolvable:$true] %s194
          %200 = dma.vmem_to_hbm [thread:$0]  %s195, 128, %s193, %s180, 32, 32, 2
        $region32: #{tpu_custom_call.1} parent=23 // pred_fallthru
          _
      $region24: #{tpu_custom_call.1} parent=5 // pred_fallthru
        _
      %p201 = scmp.le.s32.totalorder 2, %s13
      // Predicated region
      $region33: #{tpu_custom_call.1} parent=5 // pred_check
        %p202 = pneg %p201
      $region34: #{tpu_custom_call.1} parent=5 // pred_check_branch
        %204 = sbr.rel (%p202) target = $region36
      $region35: #{tpu_custom_call.1} parent=5 // pred_region
        %s205 = ssub.s32 %s13, 2
        // Predicated region
        $region37: #{tpu_custom_call.1} parent=35 // pred_check
          %p206 = pneg %p84
        $region38: #{tpu_custom_call.1} parent=35 // pred_check_branch
          %208 = sbr.rel (%p206) target = $region40
        $region39: #{tpu_custom_call.1} parent=35 // pred_region
          %s209 = sand.u32 %s69, 1
          %s210 = scalar_lea.sflag [#allocation4], %s209
          %s211 = sand.u32 %s69, 1
          %s212 = smul.addr %s211, 8
          %s213 = scalar_lea.vmem [#allocation5], %s212
          %214 = dma.done %s210, 128
        $region40: #{tpu_custom_call.1} parent=35 // pred_fallthru
          _
      $region36: #{tpu_custom_call.1} parent=5 // pred_fallthru
        _
    $region6: #{tpu_custom_call.1} parent=1 // loop_footer
      %s17 = sadd.s32 1, %s13
    $region7: #{tpu_custom_call.1} parent=1 // loop_footer_branch
      %12 = sbr.rel target = $region3
    $region8: #{tpu_custom_call.1} parent=1 // loop_exit
      _
    %215 = vsyncpa [#allocation3], 1
    %s216 = scalar_lea.sflag [#allocation3], 1
    %217 = vsyncpa %s216, 1
    %218 = vsyncpa [#allocation4], 1
    %s219 = scalar_lea.sflag [#allocation4], 1
    %220 = vsyncpa %s219, 1

</llo_original>
